<compile_context>
chip_gen: v6e
topology: v6e:2x2x1
jax: 0.10.0
libtpu: 0.0.40
codegen_flags: <defaults>
</compile_context>

<pallas_src>
import numpy as np
import jax
import jax.numpy as jnp
from jax import lax
from jax.experimental import pallas as pl
from jax.experimental.pallas import tpu as pltpu


# ----------------------------------------------------------------------------
# Kernel 1: weight sampling  W = mean + exp(0.5 * logvar) * eps
# ----------------------------------------------------------------------------
def _sample_weight_kernel(wm_ref, wlv_ref, eps_ref, w_ref):
    # VPU mul/add + EUP exp, pure elementwise on a (tn, tk) tile.
    w_ref[...] = wm_ref[...] + jnp.exp(0.5 * wlv_ref[...]) * eps_ref[...]


# ----------------------------------------------------------------------------
# Kernel 2: fused matmul + bias  y = x @ W.T + bias  (K-tiled accumulation)
# ----------------------------------------------------------------------------
def _linear_bias_kernel(x_ref, w_ref, b_ref, o_ref, acc_ref):
    @pl.when(pl.program_id(2) == 0)
    def _():
        acc_ref[...] = jnp.zeros_like(acc_ref)

    # Contract the K axis of x[tm, tk] against the K (last) axis of W[tn, tk]
    # directly -- no transpose materialized, MXU f32 accumulation.
    acc_ref[...] += lax.dot_general(
        x_ref[...],
        w_ref[...],
        dimension_numbers=(((1,), (1,)), ((), ())),
        preferred_element_type=jnp.float32,
    )

    @pl.when(pl.program_id(2) == pl.num_programs(2) - 1)
    def _():
        o_ref[...] = (acc_ref[...] + b_ref[...]).astype(o_ref.dtype)


# ----------------------------------------------------------------------------
# Wrappers
# ----------------------------------------------------------------------------
def _pick_tile(dim, candidates):
    """Largest candidate that evenly divides `dim`; else a single full block."""
    for t in candidates:
        if t <= dim and dim % t == 0:
            return t
    return dim


def sample_weights(weight_mean, weight_logvar, eps, *, tn=256, tk=512):
    """Pallas: W = weight_mean + exp(0.5 * weight_logvar) * eps, tiled over (N, K)."""
    N, K = weight_mean.shape
    tn = _pick_tile(N, (tn, 512, 256, 128))
    tk = _pick_tile(K, (tk, 1024, 512, 256, 128))
    grid = (N // tn, K // tk)

    spec = pl.BlockSpec((tn, tk), lambda i, j: (i, j))
    return pl.pallas_call(
        _sample_weight_kernel,
        out_shape=jax.ShapeDtypeStruct((N, K), weight_mean.dtype),
        grid_spec=pltpu.PrefetchScalarGridSpec(
            num_scalar_prefetch=0,
            grid=grid,
            in_specs=[spec, spec, spec],
            out_specs=spec,
        ),
        compiler_params=pltpu.CompilerParams(
            dimension_semantics=("parallel", "parallel"),
            vmem_limit_bytes=48 << 20,
        ),
    )(weight_mean, weight_logvar, eps)


def linear_bias_forward(x, w, bias, *, tm=128, tn=256, tk=512):
    """Pallas: y = x @ w.T + bias with a (B, N, K) tiled grid.

    x:    [B, K] f32
    w:    [N, K] f32 (sampled weights, PyTorch nn.Linear layout)
    bias: [N]    f32
    ->    [B, N] f32
    """
    B, K = x.shape
    N, K2 = w.shape
    assert K == K2 and bias.shape == (N,)

    tm = _pick_tile(B, (tm, 128, 64, 32, 16, 8))
    tn = _pick_tile(N, (tn, 512, 256, 128))
    tk = _pick_tile(K, (tk, 1024, 512, 256, 128))
    grid = (B // tm, N // tn, K // tk)

    bias2d = bias.reshape(1, N)

    return pl.pallas_call(
        _linear_bias_kernel,
        out_shape=jax.ShapeDtypeStruct((B, N), x.dtype),
        grid_spec=pltpu.PrefetchScalarGridSpec(
            num_scalar_prefetch=0,
            grid=grid,
            in_specs=[
                pl.BlockSpec((tm, tk), lambda i, j, k: (i, k)),   # x tile
                pl.BlockSpec((tn, tk), lambda i, j, k: (j, k)),   # W tile ([N,K] layout)
                pl.BlockSpec((1, tn), lambda i, j, k: (0, j)),    # bias tile
            ],
            out_specs=pl.BlockSpec((tm, tn), lambda i, j, k: (i, j)),
            scratch_shapes=[pltpu.VMEM((tm, tn), jnp.float32)],   # f32 accumulator
        ),
        compiler_params=pltpu.CompilerParams(
            dimension_semantics=("parallel", "parallel", "arbitrary"),
            vmem_limit_bytes=48 << 20,
        ),
    )(x, w, bias2d)


class BayesianLinearPallas:
    """Mirrors BayesianLinear: samples W each forward, caches it; cached path
    streams only W through a plain fused matmul+bias kernel."""

    def __init__(self, weight_mean, bias, key, prior_scale=0.01):
        self.weight_mean = weight_mean            # [N, K]
        self.bias = bias                          # [N]
        # weight_logvar = -log(2**16) + 0.5 * randn_like(weight_mean)
        self.weight_logvar = (
            -np.log(2.0 ** 16)
            + 0.5 * jax.random.normal(key, weight_mean.shape, jnp.float32)
        )
        self.prior_scale = prior_scale
        self._cached_W = None
        self._last_eps = None

    def __call__(self, x, key=None, use_cached_sample=False):
        if use_cached_sample and self._cached_W is not None:
            W = self._cached_W                    # fast path: only W is streamed
        else:
            assert key is not None, "need a PRNG key to draw a fresh weight sample"
            eps = jax.random.normal(key, self.weight_mean.shape, jnp.float32)
            W = sample_weights(self.weight_mean, self.weight_logvar, eps)
            self._cached_W = W
            self._last_eps = eps                  # kept only for the reference check
        return linear_bias_forward(x, W, self.bias)

    # TODO(synk): kl() (Normal-Normal KL of posterior vs prior) is a training-time
    # scalar reduction, not part of the forward pass; implement in plain JAX if needed.


if __name__ == "__main__":
    # Small but lane-dense shapes (N, K multiples of 128 -> unmasked vector stores).
    B, K, N = 8, 128, 128

    root = jax.random.PRNGKey(0)
    k_wm, k_b, k_lv, k_x, k_eps = jax.random.split(root, 5)

    # Deterministic "prior" Linear params (kaiming-uniform-ish bound like nn.Linear).
    bound = 1.0 / np.sqrt(K)
    weight_mean = jax.random.uniform(k_wm, (N, K), jnp.float32, -bound, bound)
    bias = jax.random.uniform(k_b, (N,), jnp.float32, -bound, bound)

    layer = BayesianLinearPallas(weight_mean, bias, k_lv)
    x = jax.random.normal(k_x, (B, K), jnp.float32)

    # Fresh-sample path (sampling kernel + matmul kernel).
    y = jax.block_until_ready(layer(x, key=k_eps))

    # Reference check in plain JAX (same math as the PyTorch forward).
    eps = layer._last_eps
    W_ref = weight_mean + jnp.exp(0.5 * layer.weight_logvar) * eps
    y_ref = x @ W_ref.T + bias
    np.testing.assert_allclose(np.asarray(layer._cached_W), np.asarray(W_ref),
                               rtol=1e-6, atol=1e-6)
    np.testing.assert_allclose(np.asarray(y), np.asarray(y_ref), rtol=1e-5, atol=1e-5)

    # Cached-sample path (reuses the cached W, streams only W).
    y2 = jax.block_until_ready(layer(x, use_cached_sample=True))
    np.testing.assert_allclose(np.asarray(y2), np.asarray(y), rtol=1e-6, atol=1e-6)

    print("KERNEL_OK")
</pallas_src>

<mosaic_0001>
module attributes {stable_mosaic.version = 11 : i64} {
  func.func @_sample_weight_kernel(%arg0: i32, %arg1: i32, %arg2: memref<128x128xf32, #tpu.memory_space<vmem>>, %arg3: memref<128x128xf32, #tpu.memory_space<vmem>>, %arg4: memref<128x128xf32, #tpu.memory_space<vmem>>, %arg5: memref<128x128xf32, #tpu.memory_space<vmem>>) attributes {dimension_semantics = [#tpu.dimension_semantics<parallel>, #tpu.dimension_semantics<parallel>], iteration_bounds = array<i64: 1, 1>, scalar_prefetch = 0 : i64, scratch_operands = 0 : i64, tpu.core_type = #tpu.core_type<tc>, window_params = [{transform_indices = @transform_0, window_bounds = array<i64: 128, 128>}, {transform_indices = @transform_1, window_bounds = array<i64: 128, 128>}, {transform_indices = @transform_2, window_bounds = array<i64: 128, 128>}, {transform_indices = @transform_3, window_bounds = array<i64: 128, 128>}]} {
    %c0 = arith.constant 0 : index
    %c0_0 = arith.constant 0 : index
    %0 = vector.load %arg2[%c0, %c0_0] : memref<128x128xf32, #tpu.memory_space<vmem>>, vector<128x128xf32>
    %c0_1 = arith.constant 0 : index
    %c0_2 = arith.constant 0 : index
    %1 = vector.load %arg3[%c0_1, %c0_2] : memref<128x128xf32, #tpu.memory_space<vmem>>, vector<128x128xf32>
    %cst = arith.constant 5.000000e-01 : f32
    %2 = vector.broadcast %cst : f32 to vector<128x128xf32>
    %3 = arith.mulf %2, %1 : vector<128x128xf32>
    %4 = math.exp %3 : vector<128x128xf32>
    %c0_3 = arith.constant 0 : index
    %c0_4 = arith.constant 0 : index
    %5 = vector.load %arg4[%c0_3, %c0_4] : memref<128x128xf32, #tpu.memory_space<vmem>>, vector<128x128xf32>
    %6 = arith.mulf %4, %5 : vector<128x128xf32>
    %7 = arith.addf %0, %6 : vector<128x128xf32>
    %c0_5 = arith.constant 0 : index
    %c0_6 = arith.constant 0 : index
    %8 = vector.load %arg5[%c0_5, %c0_6] : memref<128x128xf32, #tpu.memory_space<vmem>>, vector<128x128xf32>
    tpu.vector_store %arg5[%c0_5, %c0_6], %7 {strides = array<i32>} : memref<128x128xf32, #tpu.memory_space<vmem>>, vector<128x128xf32>,
    return
  }
  func.func @transform_0(%arg0: i32, %arg1: i32) -> (i32, i32) {
    %c0_i32 = arith.constant 0 : i32
    return %arg0, %arg1 : i32, i32
  }
  func.func @transform_1(%arg0: i32, %arg1: i32) -> (i32, i32) {
    %c0_i32 = arith.constant 0 : i32
    return %arg0, %arg1 : i32, i32
  }
  func.func @transform_2(%arg0: i32, %arg1: i32) -> (i32, i32) {
    %c0_i32 = arith.constant 0 : i32
    return %arg0, %arg1 : i32, i32
  }
  func.func @transform_3(%arg0: i32, %arg1: i32) -> (i32, i32) {
    %c0_i32 = arith.constant 0 : i32
    return %arg0, %arg1 : i32, i32
  }
}

</mosaic_0001>

<llo_original>
// kernel: tpu_custom_call.1
$region0: #{tpu_custom_call.1}
  #allocation0 [shape = 'u32[]', space=smem, size = 0x4, offset = 0x4, fixed_abs, tag = 'smem constant byte address 0x4 - core index']
  #allocation1 [shape = 'u32[144,128]{1,0:T(1,128)}', space=vmem, size = 0x12000, scoped, tag = 'internal scratch']
  %s0 = inlined_call_operand.hbm [shape: f32[128,128], index: 0, kind: input, shape index: {}]
  %s1 = inlined_call_operand.hbm [shape: f32[128,128], index: 1, kind: input, shape index: {}]
  %s2 = inlined_call_operand.hbm [shape: f32[128,128], index: 2, kind: input, shape index: {}]
  %s3 = inlined_call_operand.hbm [shape: f32[128,128], index: 3, kind: output, shape index: {}]
  %s4 = sld [smem:[#allocation0]]
  $region34: #{tpu_custom_call.1} parent=0
    _
  %s6 = ssub.s32 1, %s4
  %s7 = scalar_select 0, %s6, %s4
  $region1: #{tpu_custom_call.1} parent=0
    #allocation2 [shape = 'u8[65536]{0}', space=vmem, size = 0x10000, scoped, tag = 'input window, operand 0, single buffered']
    #allocation3 [shape = 's32[1]{0}', space=sflag, size = 0x4, scoped, tag = 'scoped memory for tpu_custom_call.1']
    #allocation4 [shape = 's32[1]{0}', space=sflag, size = 0x4, scoped, tag = 'scoped memory for tpu_custom_call.1']
    #allocation5 [shape = 'u8[65536]{0}', space=vmem, size = 0x10000, scoped, tag = 'input window, operand 1, single buffered']
    #allocation6 [shape = 's32[1]{0}', space=sflag, size = 0x4, scoped, tag = 'scoped memory for tpu_custom_call.1']
    #allocation7 [shape = 'u8[65536]{0}', space=vmem, size = 0x10000, scoped, tag = 'input window, operand 2, single buffered']
    #allocation8 [shape = 'u8[65536]{0}', space=vmem, size = 0x10000, scoped, tag = 'output window, operand 0, single buffered']
    %8 = vsyncpa [#allocation3], 0
    %9 = vsyncpa [#allocation6], 0
    %10 = vsyncpa [#allocation4], 0
    // Predicated region
    $region2: #{tpu_custom_call.1} parent=1 // pred_check
      _
    $region3: #{tpu_custom_call.1} parent=1 // pred_check_branch
      %12 = sbr.rel (0) target = $region5
    $region4: #{tpu_custom_call.1} parent=1 // pred_region
      %s14 = ssub.s32 2048, 2048
      %15 = vsyncadd [#allocation3], %s14
      %s16 = sshll.u32 [#allocation2], 4
      %s17 = int_to_ptr.vmem [resolvable:$true] %s16
      %22 = dma.hbm_to_vmem [thread:$0]  %s0, 2048, %s17, [#allocation3], 128, 128, 8
    $region5: #{tpu_custom_call.1} parent=1 // pred_fallthru
      _
    // Predicated region
    $region6: #{tpu_custom_call.1} parent=1 // pred_check
      _
    $region7: #{tpu_custom_call.1} parent=1 // pred_check_branch
      %24 = sbr.rel (0) target = $region9
    $region8: #{tpu_custom_call.1} parent=1 // pred_region
      %s26 = ssub.s32 2048, 2048
      %27 = vsyncadd [#allocation6], %s26
      %s28 = sshll.u32 [#allocation5], 4
      %s29 = int_to_ptr.vmem [resolvable:$true] %s28
      %34 = dma.hbm_to_vmem [thread:$0]  %s1, 2048, %s29, [#allocation6], 128, 128, 8
    $region9: #{tpu_custom_call.1} parent=1 // pred_fallthru
      _
    // Predicated region
    $region10: #{tpu_custom_call.1} parent=1 // pred_check
      _
    $region11: #{tpu_custom_call.1} parent=1 // pred_check_branch
      %36 = sbr.rel (0) target = $region13
    $region12: #{tpu_custom_call.1} parent=1 // pred_region
      %s38 = ssub.s32 2048, 2048
      %39 = vsyncadd [#allocation6], %s38
      %s40 = sshll.u32 [#allocation7], 4
      %s41 = int_to_ptr.vmem [resolvable:$true] %s40
      %46 = dma.hbm_to_vmem [thread:$0]  %s2, 2048, %s41, [#allocation6], 128, 128, 8
    $region13: #{tpu_custom_call.1} parent=1 // pred_fallthru
      _
    // Predicated region
    $region14: #{tpu_custom_call.1} parent=1 // pred_check
      _
    $region15: #{tpu_custom_call.1} parent=1 // pred_check_branch
      %48 = sbr.rel (0) target = $region17
    $region16: #{tpu_custom_call.1} parent=1 // pred_region
      %49 = dma.done [#allocation3], 2048
    $region17: #{tpu_custom_call.1} parent=1 // pred_fallthru
      _
    // Predicated region
    $region18: #{tpu_custom_call.1} parent=1 // pred_check
      _
    $region19: #{tpu_custom_call.1} parent=1 // pred_check_branch
      %51 = sbr.rel (0) target = $region21
    $region20: #{tpu_custom_call.1} parent=1 // pred_region
      %52 = dma.done [#allocation6], 2048
    $region21: #{tpu_custom_call.1} parent=1 // pred_fallthru
      _
    // Predicated region
    $region22: #{tpu_custom_call.1} parent=1 // pred_check
      _
    $region23: #{tpu_custom_call.1} parent=1 // pred_check_branch
      %54 = sbr.rel (0) target = $region25
    $region24: #{tpu_custom_call.1} parent=1 // pred_region
      %55 = dma.done [#allocation6], 2048
    $region25: #{tpu_custom_call.1} parent=1 // pred_fallthru
      _
    %v56 = vld [vmem:[#allocation2] sm:$0xff]
    %v57 = vld [vmem:[#allocation2 + $0x8] sm:$0xff]
    %v58 = vld [vmem:[#allocation2 + $0x10] sm:$0xff]
    %v59 = vld [vmem:[#allocation2 + $0x18] sm:$0xff]
    %v60 = vld [vmem:[#allocation2 + $0x20] sm:$0xff]
    %v61 = vld [vmem:[#allocation2 + $0x28] sm:$0xff]
    %v62 = vld [vmem:[#allocation2 + $0x30] sm:$0xff]
    %v63 = vld [vmem:[#allocation2 + $0x38] sm:$0xff]
    %v64 = vld [vmem:[#allocation2 + $0x40] sm:$0xff]
    %v65 = vld [vmem:[#allocation2 + $0x48] sm:$0xff]
    %v66 = vld [vmem:[#allocation2 + $0x50] sm:$0xff]
    %v67 = vld [vmem:[#allocation2 + $0x58] sm:$0xff]
    %v68 = vld [vmem:[#allocation2 + $0x60] sm:$0xff]
    %v69 = vld [vmem:[#allocation2 + $0x68] sm:$0xff]
    %v70 = vld [vmem:[#allocation2 + $0x70] sm:$0xff]
    %v71 = vld [vmem:[#allocation2 + $0x78] sm:$0xff]
    %v72 = vld [vmem:[#allocation5] sm:$0xff]
    %v73 = vld [vmem:[#allocation5 + $0x8] sm:$0xff]
    %v74 = vld [vmem:[#allocation5 + $0x10] sm:$0xff]
    %v75 = vld [vmem:[#allocation5 + $0x18] sm:$0xff]
    %v76 = vld [vmem:[#allocation5 + $0x20] sm:$0xff]
    %v77 = vld [vmem:[#allocation5 + $0x28] sm:$0xff]
    %v78 = vld [vmem:[#allocation5 + $0x30] sm:$0xff]
    %v79 = vld [vmem:[#allocation5 + $0x38] sm:$0xff]
    %v80 = vld [vmem:[#allocation5 + $0x40] sm:$0xff]
    %v81 = vld [vmem:[#allocation5 + $0x48] sm:$0xff]
    %v82 = vld [vmem:[#allocation5 + $0x50] sm:$0xff]
    %v83 = vld [vmem:[#allocation5 + $0x58] sm:$0xff]
    %v84 = vld [vmem:[#allocation5 + $0x60] sm:$0xff]
    %v85 = vld [vmem:[#allocation5 + $0x68] sm:$0xff]
    %v86 = vld [vmem:[#allocation5 + $0x70] sm:$0xff]
    %v87 = vld [vmem:[#allocation5 + $0x78] sm:$0xff]
    %v88 = vmul.f32 %v72, 0.5
    %v89 = vmul.f32 %v73, 0.5
    %v90 = vmul.f32 %v74, 0.5
    %v91 = vmul.f32 %v75, 0.5
    %v92 = vmul.f32 %v76, 0.5
    %v93 = vmul.f32 %v77, 0.5
    %v94 = vmul.f32 %v78, 0.5
    %v95 = vmul.f32 %v79, 0.5
    %v96 = vmul.f32 %v80, 0.5
    %v97 = vmul.f32 %v81, 0.5
    %v98 = vmul.f32 %v82, 0.5
    %v99 = vmul.f32 %v83, 0.5
    %v100 = vmul.f32 %v84, 0.5
    %v101 = vmul.f32 %v85, 0.5
    %v102 = vmul.f32 %v86, 0.5
    %v103 = vmul.f32 %v87, 0.5
    %v104 = vmul.f32 %v88, 1.442695
    %v105 = vpow.pop %v104
    %v106 = vmul.f32 %v89, 1.442695
    %v107 = vpow.pop %v106
    %v108 = vmul.f32 %v90, 1.442695
    %v109 = vpow.pop %v108
    %v110 = vmul.f32 %v91, 1.442695
    %v111 = vpow.pop %v110
    %v112 = vmul.f32 %v92, 1.442695
    %v113 = vpow.pop %v112
    %v114 = vmul.f32 %v93, 1.442695
    %v115 = vpow.pop %v114
    %v116 = vmul.f32 %v94, 1.442695
    %v117 = vpow.pop %v116
    %v118 = vmul.f32 %v95, 1.442695
    %v119 = vpow.pop %v118
    %v120 = vmul.f32 %v96, 1.442695
    %v121 = vpow.pop %v120
    %v122 = vmul.f32 %v97, 1.442695
    %v123 = vpow.pop %v122
    %v124 = vmul.f32 %v98, 1.442695
    %v125 = vpow.pop %v124
    %v126 = vmul.f32 %v99, 1.442695
    %v127 = vpow.pop %v126
    %v128 = vmul.f32 %v100, 1.442695
    %v129 = vpow.pop %v128
    %v130 = vmul.f32 %v101, 1.442695
    %v131 = vpow.pop %v130
    %v132 = vmul.f32 %v102, 1.442695
    %v133 = vpow.pop %v132
    %v134 = vmul.f32 %v103, 1.442695
    %v135 = vpow.pop %v134
    %v136 = vld [vmem:[#allocation7] sm:$0xff]
    %v137 = vld [vmem:[#allocation7 + $0x8] sm:$0xff]
    %v138 = vld [vmem:[#allocation7 + $0x10] sm:$0xff]
    %v139 = vld [vmem:[#allocation7 + $0x18] sm:$0xff]
    %v140 = vld [vmem:[#allocation7 + $0x20] sm:$0xff]
    %v141 = vld [vmem:[#allocation7 + $0x28] sm:$0xff]
    %v142 = vld [vmem:[#allocation7 + $0x30] sm:$0xff]
    %v143 = vld [vmem:[#allocation7 + $0x38] sm:$0xff]
    %v144 = vld [vmem:[#allocation7 + $0x40] sm:$0xff]
    %v145 = vld [vmem:[#allocation7 + $0x48] sm:$0xff]
    %v146 = vld [vmem:[#allocation7 + $0x50] sm:$0xff]
    %v147 = vld [vmem:[#allocation7 + $0x58] sm:$0xff]
    %v148 = vld [vmem:[#allocation7 + $0x60] sm:$0xff]
    %v149 = vld [vmem:[#allocation7 + $0x68] sm:$0xff]
    %v150 = vld [vmem:[#allocation7 + $0x70] sm:$0xff]
    %v151 = vld [vmem:[#allocation7 + $0x78] sm:$0xff]
    %v152 = vmul.f32 %v105, %v136
    %v153 = vmul.f32 %v107, %v137
    %v154 = vmul.f32 %v109, %v138
    %v155 = vmul.f32 %v111, %v139
    %v156 = vmul.f32 %v113, %v140
    %v157 = vmul.f32 %v115, %v141
    %v158 = vmul.f32 %v117, %v142
    %v159 = vmul.f32 %v119, %v143
    %v160 = vmul.f32 %v121, %v144
    %v161 = vmul.f32 %v123, %v145
    %v162 = vmul.f32 %v125, %v146
    %v163 = vmul.f32 %v127, %v147
    %v164 = vmul.f32 %v129, %v148
    %v165 = vmul.f32 %v131, %v149
    %v166 = vmul.f32 %v133, %v150
    %v167 = vmul.f32 %v135, %v151
    %v168 = vadd.f32 %v56, %v152
    %v169 = vadd.f32 %v57, %v153
    %v170 = vadd.f32 %v58, %v154
    %v171 = vadd.f32 %v59, %v155
    %v172 = vadd.f32 %v60, %v156
    %v173 = vadd.f32 %v61, %v157
    %v174 = vadd.f32 %v62, %v158
    %v175 = vadd.f32 %v63, %v159
    %v176 = vadd.f32 %v64, %v160
    %v177 = vadd.f32 %v65, %v161
    %v178 = vadd.f32 %v66, %v162
    %v179 = vadd.f32 %v67, %v163
    %v180 = vadd.f32 %v68, %v164
    %v181 = vadd.f32 %v69, %v165
    %v182 = vadd.f32 %v70, %v166
    %v183 = vadd.f32 %v71, %v167
    %184 = vst [vmem:[#allocation8] sm:$0xff] %v168
    %185 = vst [vmem:[#allocation8 + $0x8] sm:$0xff] %v169
    %186 = vst [vmem:[#allocation8 + $0x10] sm:$0xff] %v170
    %187 = vst [vmem:[#allocation8 + $0x18] sm:$0xff] %v171
    %188 = vst [vmem:[#allocation8 + $0x20] sm:$0xff] %v172
    %189 = vst [vmem:[#allocation8 + $0x28] sm:$0xff] %v173
    %190 = vst [vmem:[#allocation8 + $0x30] sm:$0xff] %v174
    %191 = vst [vmem:[#allocation8 + $0x38] sm:$0xff] %v175
    %192 = vst [vmem:[#allocation8 + $0x40] sm:$0xff] %v176
    %193 = vst [vmem:[#allocation8 + $0x48] sm:$0xff] %v177
    %194 = vst [vmem:[#allocation8 + $0x50] sm:$0xff] %v178
    %195 = vst [vmem:[#allocation8 + $0x58] sm:$0xff] %v179
    %196 = vst [vmem:[#allocation8 + $0x60] sm:$0xff] %v180
    %197 = vst [vmem:[#allocation8 + $0x68] sm:$0xff] %v181
    %198 = vst [vmem:[#allocation8 + $0x70] sm:$0xff] %v182
    %199 = vst [vmem:[#allocation8 + $0x78] sm:$0xff] %v183
    // Predicated region
    $region26: #{tpu_custom_call.1} parent=1 // pred_check
      _
    $region27: #{tpu_custom_call.1} parent=1 // pred_check_branch
      %201 = sbr.rel (0) target = $region29
    $region28: #{tpu_custom_call.1} parent=1 // pred_region
      %s203 = ssub.s32 2048, 2048
      %204 = vsyncadd [#allocation4], %s203
      %s205 = sshll.u32 [#allocation8], 4
      %s206 = int_to_ptr.vmem [resolvable:$true] %s205
      %211 = dma.vmem_to_hbm [thread:$0]  %s206, 2048, %s3, [#allocation4], 128, 128, 8
    $region29: #{tpu_custom_call.1} parent=1 // pred_fallthru
      _
    // Predicated region
    $region30: #{tpu_custom_call.1} parent=1 // pred_check
      _
    $region31: #{tpu_custom_call.1} parent=1 // pred_check_branch
      %213 = sbr.rel (0) target = $region33
    $region32: #{tpu_custom_call.1} parent=1 // pred_region
      %214 = dma.done [#allocation4], 2048
    $region33: #{tpu_custom_call.1} parent=1 // pred_fallthru
      _
    %215 = vsyncpa [#allocation3], 1
    %216 = vsyncpa [#allocation6], 1
    %217 = vsyncpa [#allocation4], 1

</llo_original>
